<compile_context>
chip_gen: v6e
topology: v6e:2x2x1
jax: 0.10.0
libtpu: 0.0.40
codegen_flags: <defaults>
</compile_context>

<pallas_src>
import functools
import math

import jax
import jax.numpy as jnp
from jax.experimental import pallas as pl
from jax.experimental.pallas import tpu as pltpu


_LANE = 128
_SUBLANE = 8
_MAX_BATCH_TILE = 256
_VMEM_TILE_BUDGET = 28 * 1024 * 1024   # conservative: fits v5e/v6e/v7x scoped VMEM
_VMEM_LIMIT_BYTES = 40 * 1024 * 1024   # raise v5e's 16 MiB default; < v7x's 64 MiB


def _round_up(n, m):
    return ((n + m - 1) // m) * m


def _tile_candidates(hp):
    """128-multiple tile sizes that evenly divide hp, descending."""
    return [t for t in range(hp, _LANE - 1, -_LANE) if hp % t == 0]


def _single_k_vmem(tb, hp, tn):
    # double-buffered x / weight / out blocks + bias & diag rows (all f32).
    return 4 * (2 * tb * hp + 2 * hp * tn + 2 * tb * tn + 4 * tn)


def _multi_k_vmem(tb, t):
    # double-buffered x / weight / out blocks + f32 accumulator + rows.
    return 4 * (2 * tb * t + 2 * t * t + 2 * tb * t + tb * t + 4 * t)


# ----------------------------------------------------------------------------
# Kernels
# ----------------------------------------------------------------------------
def _ei_single_k_kernel(xs_ref, wt_ref, d_ref, b_ref, o_ref):
    """Grid (i, j), single contraction step.

    o[i, j] = (x*sign)[i, :] @ |W^T|[:, j]  -  (x*sign)[i, cols(j)] * |diag(W)[j]|
              + bias[j]
    The second term removes the self-connection (zero diagonal) without masking
    the full weight tile.
    """
    j = pl.program_id(1)
    tn = o_ref.shape[-1]

    acc = jnp.dot(xs_ref[...], jnp.abs(wt_ref[...]),
                  preferred_element_type=jnp.float32)

    # x block covers the full (padded) feature dim and starts at column 0, so
    # in-block columns are absolute columns; slice the ones for this j tile.
    col0 = pl.multiple_of(j * tn, _LANE)
    xs_cols = xs_ref[:, pl.ds(col0, tn)].astype(jnp.float32)

    o_ref[...] = (acc - xs_cols * d_ref[...] + b_ref[...]).astype(o_ref.dtype)


def _ei_multi_k_kernel(xs_ref, wt_ref, d_ref, b_ref, o_ref, acc_ref):
    """Grid (i, j, k) fallback for very large H (tiled K reduction)."""
    j = pl.program_id(1)
    k = pl.program_id(2)

    @pl.when(k == 0)
    def _():
        acc_ref[...] = jnp.zeros_like(acc_ref)

    acc_ref[...] += jnp.dot(xs_ref[...], jnp.abs(wt_ref[...]),
                            preferred_element_type=jnp.float32)

    # Self-connection removal: with tk == tn and identical, aligned K/N tilings
    # the diagonal of W lives only in the k == j tiles, and there the x block's
    # columns line up with this output block's columns, so an elementwise
    # (x*sign) * |diag(W)| correction replaces per-step iota masking.
    @pl.when(k == j)
    def _():
        acc_ref[...] -= xs_ref[...].astype(jnp.float32) * d_ref[...]

    @pl.when(k == pl.num_programs(2) - 1)
    def _():
        o_ref[...] = (acc_ref[...] + b_ref[...]).astype(o_ref.dtype)


# ----------------------------------------------------------------------------
# Wrapper
# ----------------------------------------------------------------------------
@functools.partial(jax.jit, static_argnames=("vmem_tile_budget",))
def ei_rec_linear(x, weight, bias, e_size, *, vmem_tile_budget=_VMEM_TILE_BUDGET):
    """Pallas forward of EIRecLinear.

    x:      (B, H) float32
    weight: (H, H) float32, nn.Linear layout (row = output unit)
    bias:   (H,)   float32 or None
    e_size: number of excitatory (sign +1) presynaptic units
    """
    B, H = x.shape
    assert weight.shape == (H, H)
    dtype = x.dtype

    if bias is None:
        bias = jnp.zeros((H,), dtype)

    # ---- layout plumbing (done once, outside the kernel) --------------------
    Hp = _round_up(H, _LANE)       # lane-dense feature dim
    Bp = _round_up(B, _SUBLANE)    # sublane-dense batch dim
    if Bp <= _MAX_BATCH_TILE:
        tb = Bp                    # whole batch in one tile -> weight read once
    else:
        tb = _MAX_BATCH_TILE
        Bp = _round_up(B, tb)

    # E/I sign per presynaptic unit (column of W), folded into the activations
    # during the padding copy (fuses with the pad scatter in XLA).
    col = jnp.arange(H)
    sign = jnp.where(col < e_size, 1.0, -1.0).astype(dtype)
    xs = jnp.zeros((Bp, Hp), dtype).at[:B, :H].set(x * sign[None, :])

    # Pre-transposed weight so the MXU contracts x(B,K) @ Wt(K,N) natively;
    # abs() is applied in-kernel (padded zeros are abs-invariant).
    wt = jnp.zeros((Hp, Hp), dtype).at[:H, :H].set(weight.T)

    # |diag(W)|: used to subtract the self-connection term in-kernel instead of
    # iota-masking the full weight tile every grid step.
    dvec = jnp.zeros((1, Hp), jnp.float32).at[0, :H].set(
        jnp.abs(jnp.diagonal(weight)).astype(jnp.float32))
    bias2d = jnp.zeros((1, Hp), jnp.float32).at[0, :H].set(
        bias.astype(jnp.float32))

    # ---- tile selection ------------------------------------------------------
    cands = _tile_candidates(Hp)
    single_k_tn = next(
        (t for t in cands if _single_k_vmem(tb, Hp, t) <= vmem_tile_budget), None)

    common_compiler = dict(vmem_limit_bytes=_VMEM_LIMIT_BYTES)

    if single_k_tn is not None:
        tn = single_k_tn
        # Prefer >= 2 output-column tiles so the "parallel" j axis can shard
        # across v7x's two TensorCores (total HBM traffic unchanged; near
        # neutral on single-TC v5e/v6e).
        if tn == Hp and Hp >= 2 * _LANE and Hp % (2 * _LANE) == 0:
            tn = Hp // 2
        grid = (Bp // tb, Hp // tn)

        out = pl.pallas_call(
            _ei_single_k_kernel,
            out_shape=jax.ShapeDtypeStruct((Bp, Hp), dtype),
            grid_spec=pltpu.PrefetchScalarGridSpec(
                num_scalar_prefetch=0,
                grid=grid,
                in_specs=[
                    pl.BlockSpec((tb, Hp), lambda i, j: (i, 0)),   # x*sign, full K
                    pl.BlockSpec((Hp, tn), lambda i, j: (0, j)),   # W^T column block
                    pl.BlockSpec((1, tn), lambda i, j: (0, j)),    # |diag(W)|
                    pl.BlockSpec((1, tn), lambda i, j: (0, j)),    # bias
                ],
                out_specs=pl.BlockSpec((tb, tn), lambda i, j: (i, j)),
            ),
            compiler_params=pltpu.CompilerParams(
                dimension_semantics=("parallel", "parallel"), **common_compiler),
        )(xs, wt, dvec, bias2d)
    else:
        # Fallback for very large H: tiled K reduction with an f32 accumulator.
        t = next((tt for tt in cands if _multi_k_vmem(tb, tt) <= vmem_tile_budget),
                 cands[-1])
        tk = tn = t
        # Equal, aligned K/N tilings are required by the k == j diagonal fix.
        assert tk == tn and Hp % tk == 0
        grid = (Bp // tb, Hp // tn, Hp // tk)

        out = pl.pallas_call(
            _ei_multi_k_kernel,
            out_shape=jax.ShapeDtypeStruct((Bp, Hp), dtype),
            grid_spec=pltpu.PrefetchScalarGridSpec(
                num_scalar_prefetch=0,
                grid=grid,
                in_specs=[
                    pl.BlockSpec((tb, tk), lambda i, j, k: (i, k)),   # x*sign
                    pl.BlockSpec((tk, tn), lambda i, j, k: (k, j)),   # W^T tile
                    pl.BlockSpec((1, tn), lambda i, j, k: (0, j)),    # |diag(W)|
                    pl.BlockSpec((1, tn), lambda i, j, k: (0, j)),    # bias
                ],
                out_specs=pl.BlockSpec((tb, tn), lambda i, j, k: (i, j)),
                scratch_shapes=[pltpu.VMEM((tb, tn), jnp.float32)],
            ),
            compiler_params=pltpu.CompilerParams(
                dimension_semantics=("parallel", "parallel", "arbitrary"),
                **common_compiler),
        )(xs, wt, dvec, bias2d)

    return out[:B, :H]


# ----------------------------------------------------------------------------
# Parameter init mirroring EIRecLinear.__init__/reset_parameters + reference
# ----------------------------------------------------------------------------
def make_ei_params(key, hidden_size, e_prop=0.8):
    e_size = int(e_prop * hidden_size)
    i_size = hidden_size - e_size

    k_w, k_b = jax.random.split(key)

    # kaiming_uniform_(weight, a=sqrt(5)) on (H, H): bound = 1/sqrt(fan_in)
    fan_in = hidden_size
    w_bound = 1.0 / math.sqrt(fan_in)
    weight = jax.random.uniform(
        k_w, (hidden_size, hidden_size), jnp.float32, minval=-w_bound, maxval=w_bound)
    # weight[:, :e_size] /= e_size / i_size
    scale = jnp.concatenate([
        jnp.full((e_size,), i_size / e_size, jnp.float32),
        jnp.ones((i_size,), jnp.float32),
    ])
    weight = weight * scale[None, :]

    b_bound = 1.0 / math.sqrt(fan_in)
    bias = jax.random.uniform(
        k_b, (hidden_size,), jnp.float32, minval=-b_bound, maxval=b_bound)

    return weight, bias, e_size, i_size


def _reference(x, weight, bias, e_size, i_size):
    H = weight.shape[0]
    row = jnp.concatenate([jnp.ones((e_size,), jnp.float32),
                           -jnp.ones((i_size,), jnp.float32)])
    mask = jnp.tile(row[None, :], (H, 1)) * (1.0 - jnp.eye(H, dtype=jnp.float32))
    eff_w = jnp.abs(weight) * mask
    return jnp.dot(x, eff_w.T, precision=jax.lax.Precision.HIGHEST) + bias


if __name__ == "__main__":
    key = jax.random.PRNGKey(0)
    k1, kx1, k2, kx2, kx3 = jax.random.split(key, 5)

    # Small shape matching the module spec: single-tile, single-K fast path.
    H1, B1 = 32, 8
    w1, b1, e1, i1 = make_ei_params(k1, H1)
    x1 = jax.random.normal(kx1, (B1, H1), jnp.float32)
    o1 = jax.block_until_ready(ei_rec_linear(x1, w1, b1, e1))
    r1 = _reference(x1, w1, b1, e1, i1)
    assert o1.shape == (B1, H1)
    assert jnp.allclose(o1, r1, atol=1e-5, rtol=1e-5), "mismatch (small)"

    # Medium shape: single-K path with a 2-way output-column split (j axis = 2).
    H2, B2 = 512, 24
    w2, b2, e2, i2 = make_ei_params(k2, H2)
    x2 = jax.random.normal(kx2, (B2, H2), jnp.float32)
    o2 = jax.block_until_ready(ei_rec_linear(x2, w2, b2, e2))
    r2 = _reference(x2, w2, b2, e2, i2)
    assert o2.shape == (B2, H2)
    assert jnp.allclose(o2, r2, atol=1e-4, rtol=1e-4), "mismatch (split-j)"

    # Coverage of the tiled-K fallback path (force it via a tiny tile budget).
    x3 = jax.random.normal(kx3, (8, H2), jnp.float32)
    o3 = jax.block_until_ready(
        ei_rec_linear(x3, w2, b2, e2, vmem_tile_budget=300 * 1024))
    r3 = _reference(x3, w2, b2, e2, i2)
    assert o3.shape == (8, H2)
    assert jnp.allclose(o3, r3, atol=1e-4, rtol=1e-4), "mismatch (tiled-K fallback)"

    print("KERNEL_OK")
</pallas_src>

<mosaic_0001>
module attributes {stable_mosaic.version = 11 : i64} {
  func.func @_ei_single_k_kernel(%arg0: i32, %arg1: i32, %arg2: memref<8x128xf32, #tpu.memory_space<vmem>>, %arg3: memref<128x128xf32, #tpu.memory_space<vmem>>, %arg4: memref<1x128xf32, #tpu.memory_space<vmem>>, %arg5: memref<1x128xf32, #tpu.memory_space<vmem>>, %arg6: memref<8x128xf32, #tpu.memory_space<vmem>>) attributes {dimension_semantics = [#tpu.dimension_semantics<parallel>, #tpu.dimension_semantics<parallel>], iteration_bounds = array<i64: 1, 1>, scalar_prefetch = 0 : i64, scratch_operands = 0 : i64, tpu.core_type = #tpu.core_type<tc>, window_params = [{transform_indices = @transform_0, window_bounds = array<i64: 8, 128>}, {transform_indices = @transform_1, window_bounds = array<i64: 128, 128>}, {transform_indices = @transform_2, window_bounds = array<i64: 1, 128>}, {transform_indices = @transform_3, window_bounds = array<i64: 1, 128>}, {transform_indices = @transform_4, window_bounds = array<i64: 8, 128>}]} {
    %c0 = arith.constant 0 : index
    %c0_0 = arith.constant 0 : index
    %0 = vector.load %arg2[%c0, %c0_0] : memref<8x128xf32, #tpu.memory_space<vmem>>, vector<8x128xf32>
    %c0_1 = arith.constant 0 : index
    %c0_2 = arith.constant 0 : index
    %1 = vector.load %arg3[%c0_1, %c0_2] : memref<128x128xf32, #tpu.memory_space<vmem>>, vector<128x128xf32>
    %2 = math.absf %1 : vector<128x128xf32>
    %cst = arith.constant dense<0.000000e+00> : vector<8x128xf32>
    %3 = tpu.matmul %0, %2, %cst {dimension_numbers = #tpu.dot_dimension_numbers<[1], [0], [0], [1], [0, 0, 1, 1], [], []>} : vector<8x128xf32>, vector<128x128xf32>, vector<8x128xf32> -> vector<8x128xf32>
    %c128_i32 = arith.constant 128 : i32
    %4 = arith.muli %arg1, %c128_i32 : i32
    %5 = tpu.assume_multiple %4, 128 : i32
    %c0_3 = arith.constant 0 : index
    %6 = arith.index_cast %5 : i32 to index
    %7 = vector.load %arg2[%c0_3, %6] : memref<8x128xf32, #tpu.memory_space<vmem>>, vector<8x128xf32>
    %c0_4 = arith.constant 0 : index
    %c0_5 = arith.constant 0 : index
    %8 = vector.load %arg4[%c0_4, %c0_5] : memref<1x128xf32, #tpu.memory_space<vmem>>, vector<1x128xf32>
    %9 = vector.broadcast %8 : vector<1x128xf32> to vector<8x128xf32>
    %10 = arith.mulf %7, %9 : vector<8x128xf32>
    %11 = arith.subf %3, %10 : vector<8x128xf32>
    %c0_6 = arith.constant 0 : index
    %c0_7 = arith.constant 0 : index
    %12 = vector.load %arg5[%c0_6, %c0_7] : memref<1x128xf32, #tpu.memory_space<vmem>>, vector<1x128xf32>
    %13 = vector.broadcast %12 : vector<1x128xf32> to vector<8x128xf32>
    %14 = arith.addf %11, %13 : vector<8x128xf32>
    %c0_8 = arith.constant 0 : index
    %c0_9 = arith.constant 0 : index
    %15 = vector.load %arg6[%c0_8, %c0_9] : memref<8x128xf32, #tpu.memory_space<vmem>>, vector<8x128xf32>
    tpu.vector_store %arg6[%c0_8, %c0_9], %14 {strides = array<i32>} : memref<8x128xf32, #tpu.memory_space<vmem>>, vector<8x128xf32>,
    return
  }
  func.func @transform_0(%arg0: i32, %arg1: i32) -> (i32, i32) {
    %c0_i32 = arith.constant 0 : i32
    %c0_i32_0 = arith.constant 0 : i32
    return %arg0, %c0_i32 : i32, i32
  }
  func.func @transform_1(%arg0: i32, %arg1: i32) -> (i32, i32) {
    %c0_i32 = arith.constant 0 : i32
    %c0_i32_0 = arith.constant 0 : i32
    return %c0_i32, %arg1 : i32, i32
  }
  func.func @transform_2(%arg0: i32, %arg1: i32) -> (i32, i32) {
    %c0_i32 = arith.constant 0 : i32
    %c0_i32_0 = arith.constant 0 : i32
    return %c0_i32, %arg1 : i32, i32
  }
  func.func @transform_3(%arg0: i32, %arg1: i32) -> (i32, i32) {
    %c0_i32 = arith.constant 0 : i32
    %c0_i32_0 = arith.constant 0 : i32
    return %c0_i32, %arg1 : i32, i32
  }
  func.func @transform_4(%arg0: i32, %arg1: i32) -> (i32, i32) {
    %c0_i32 = arith.constant 0 : i32
    return %arg0, %arg1 : i32, i32
  }
}

</mosaic_0001>

<llo_original>
// kernel: ei_rec_linear.1
$region0: #{ei_rec_linear.1}
  #allocation0 [shape = 'u32[]', space=smem, size = 0x4, offset = 0x4, fixed_abs, tag = 'smem constant byte address 0x4 - core index']
  #allocation1 [shape = 'u32[144,128]{1,0:T(1,128)}', space=vmem, size = 0x12000, scoped, tag = 'internal scratch']
  %s0 = inlined_call_operand.vmem [shape: f32[8,128], index: 0, kind: input, shape index: {}]
  %s1 = inlined_call_operand.vmem [shape: f32[128,128], index: 1, kind: input, shape index: {}]
  %s2 = inlined_call_operand.vmem [shape: f32[1,128], index: 2, kind: input, shape index: {}]
  %s3 = inlined_call_operand.vmem [shape: f32[1,128], index: 3, kind: input, shape index: {}]
  %s4 = inlined_call_operand.hbm [shape: f32[8,128], index: 4, kind: output, shape index: {}]
  %s5 = sld [smem:[#allocation0]]
  $region26: #{ei_rec_linear.1} parent=0
    _
  %s7 = ssub.s32 1, %s5
  %s8 = scalar_select 0, %s7, %s5
  $region1: #{ei_rec_linear.1} parent=0
    #allocation2 [shape = 'u8[4096]{0}', space=vmem, size = 0x1000, scoped, tag = 'output window, operand 0, single buffered']
    #allocation3 [shape = 's32[1]{0}', space=sflag, size = 0x4, scoped, tag = 'scoped memory for ei_rec_linear.1']
    %9 = vsyncpa [#allocation3], 0
    // Predicated region
    $region2: #{ei_rec_linear.1} parent=1 // pred_check
      _
    $region3: #{ei_rec_linear.1} parent=1 // pred_check_branch
      %11 = sbr.rel (0) target = $region5
    $region4: #{ei_rec_linear.1} parent=1 // pred_region
      _
    $region5: #{ei_rec_linear.1} parent=1 // pred_fallthru
      _
    // Predicated region
    $region6: #{ei_rec_linear.1} parent=1 // pred_check
      _
    $region7: #{ei_rec_linear.1} parent=1 // pred_check_branch
      %13 = sbr.rel (0) target = $region9
    $region8: #{ei_rec_linear.1} parent=1 // pred_region
      _
    $region9: #{ei_rec_linear.1} parent=1 // pred_fallthru
      _
    // Predicated region
    $region10: #{ei_rec_linear.1} parent=1 // pred_check
      _
    $region11: #{ei_rec_linear.1} parent=1 // pred_check_branch
      %15 = sbr.rel (0) target = $region13
    $region12: #{ei_rec_linear.1} parent=1 // pred_region
      _
    $region13: #{ei_rec_linear.1} parent=1 // pred_fallthru
      _
    // Predicated region
    $region14: #{ei_rec_linear.1} parent=1 // pred_check
      _
    $region15: #{ei_rec_linear.1} parent=1 // pred_check_branch
      %17 = sbr.rel (0) target = $region17
    $region16: #{ei_rec_linear.1} parent=1 // pred_region
      _
    $region17: #{ei_rec_linear.1} parent=1 // pred_fallthru
      _
    %v18 = vld [vmem:[%s0] sm:$0xff]
    %v19 = vld [vmem:[%s1] sm:$0xff]
    %v20 = vld [vmem:[%s1 + $0x8] sm:$0xff]
    %v21 = vld [vmem:[%s1 + $0x10] sm:$0xff]
    %v22 = vld [vmem:[%s1 + $0x18] sm:$0xff]
    %v23 = vld [vmem:[%s1 + $0x20] sm:$0xff]
    %v24 = vld [vmem:[%s1 + $0x28] sm:$0xff]
    %v25 = vld [vmem:[%s1 + $0x30] sm:$0xff]
    %v26 = vld [vmem:[%s1 + $0x38] sm:$0xff]
    %v27 = vld [vmem:[%s1 + $0x40] sm:$0xff]
    %v28 = vld [vmem:[%s1 + $0x48] sm:$0xff]
    %v29 = vld [vmem:[%s1 + $0x50] sm:$0xff]
    %v30 = vld [vmem:[%s1 + $0x58] sm:$0xff]
    %v31 = vld [vmem:[%s1 + $0x60] sm:$0xff]
    %v32 = vld [vmem:[%s1 + $0x68] sm:$0xff]
    %v33 = vld [vmem:[%s1 + $0x70] sm:$0xff]
    %v34 = vld [vmem:[%s1 + $0x78] sm:$0xff]
    %v35 = vand.u32 2147483647, %v19
    %v36 = vand.u32 2147483647, %v20
    %v37 = vand.u32 2147483647, %v21
    %v38 = vand.u32 2147483647, %v22
    %v39 = vand.u32 2147483647, %v23
    %v40 = vand.u32 2147483647, %v24
    %v41 = vand.u32 2147483647, %v25
    %v42 = vand.u32 2147483647, %v26
    %v43 = vand.u32 2147483647, %v27
    %v44 = vand.u32 2147483647, %v28
    %v45 = vand.u32 2147483647, %v29
    %v46 = vand.u32 2147483647, %v30
    %v47 = vand.u32 2147483647, %v31
    %v48 = vand.u32 2147483647, %v32
    %v49 = vand.u32 2147483647, %v33
    %v50 = vand.u32 2147483647, %v34
    %51 = vmatprep.subr.mxu0 0.0
    %52 = vmatpush1.msra.mxu0 %v50
    %53 = vmatprep.subr.mxu0 0.0
    %54 = vmatpush1.msra.mxu0 %v49
    %55 = vmatprep.subr.mxu0 0.0
    %56 = vmatpush1.msra.mxu0 %v48
    %57 = vmatprep.subr.mxu0 0.0
    %58 = vmatpush1.msra.mxu0 %v47
    %59 = vmatprep.subr.mxu0 0.0
    %60 = vmatpush1.msra.mxu0 %v46
    %61 = vmatprep.subr.mxu0 0.0
    %62 = vmatpush1.msra.mxu0 %v45
    %63 = vmatprep.subr.mxu0 0.0
    %64 = vmatpush1.msra.mxu0 %v44
    %65 = vmatprep.subr.mxu0 0.0
    %66 = vmatpush1.msra.mxu0 %v43
    %67 = vmatprep.subr.mxu0 0.0
    %68 = vmatpush1.msra.mxu0 %v42
    %69 = vmatprep.subr.mxu0 0.0
    %70 = vmatpush1.msra.mxu0 %v41
    %71 = vmatprep.subr.mxu0 0.0
    %72 = vmatpush1.msra.mxu0 %v40
    %73 = vmatprep.subr.mxu0 0.0
    %74 = vmatpush1.msra.mxu0 %v39
    %75 = vmatprep.subr.mxu0 0.0
    %76 = vmatpush1.msra.mxu0 %v38
    %77 = vmatprep.subr.mxu0 0.0
    %78 = vmatpush1.msra.mxu0 %v37
    %79 = vmatprep.subr.mxu0 0.0
    %80 = vmatpush1.msra.mxu0 %v36
    %81 = vmatprep.subr.mxu0 0.0
    %82 = vmatpush1.msra.mxu0 %v35
    %83 = vmatprep.subr.mxu0 0.0
    %84 = vmatpush2.msra.mxu0 0.0
    %85 = vmatprep.subr.mxu0 0.0
    %86 = vmatpush2.msra.mxu0 0.0
    %87 = vmatprep.subr.mxu0 0.0
    %88 = vmatpush2.msra.mxu0 0.0
    %89 = vmatprep.subr.mxu0 0.0
    %90 = vmatpush2.msra.mxu0 0.0
    %91 = vmatprep.subr.mxu0 0.0
    %92 = vmatpush2.msra.mxu0 0.0
    %93 = vmatprep.subr.mxu0 0.0
    %94 = vmatpush2.msra.mxu0 0.0
    %95 = vmatprep.subr.mxu0 0.0
    %96 = vmatpush2.msra.mxu0 0.0
    %97 = vmatprep.subr.mxu0 0.0
    %98 = vmatpush2.msra.mxu0 0.0
    %99 = vmatprep.subr.mxu0 0.0
    %100 = vmatpush2.msra.mxu0 0.0
    %101 = vmatprep.subr.mxu0 0.0
    %102 = vmatpush2.msra.mxu0 0.0
    %103 = vmatprep.subr.mxu0 0.0
    %104 = vmatpush2.msra.mxu0 0.0
    %105 = vmatprep.subr.mxu0 0.0
    %106 = vmatpush2.msra.mxu0 0.0
    %107 = vmatprep.subr.mxu0 0.0
    %108 = vmatpush2.msra.mxu0 0.0
    %109 = vmatprep.subr.mxu0 0.0
    %110 = vmatpush2.msra.mxu0 0.0
    %111 = vmatprep.subr.mxu0 0.0
    %112 = vmatpush2.msra.mxu0 0.0
    %113 = vmatprep.subr.mxu0 0.0
    %114 = vmatpush2.msra.mxu0 0.0
    %115 = vmatprep.mubr.f32.mxu0 0.0
    %116 = vmatmul.mubr.f32.gmra.mxu0 %v18
    %v117 = vpop.f32.mrf.mxu0
    %v118 = vadd.f32 0.0, %v117
    %v119 = vpop.f32.mrf.mxu0
    %120 = vdwg.mxu0
    %s121 = smul.u32 0, 128
    %s122 = sshra.s32 %s121, 7
    %s123 = sand.u32 %s121, 127
    %s124 = scalar_lea.vmem %s0, %s122
    %v125 = vld [vmem:[%s124] sm:$0xff]
    %v126 = vld [vmem:[%s2] sm:$0x1]
    %v128 = vlaneseq
    %v129 = vshrl.u32 %v128, 7
    %v130 = vsub.s32 0, %v129
    %v131 = vrot.slane %v126, %v130
    %v133 = vmul.f32 %v125, %v131
    %v134 = vsub.f32 %v118, %v133
    %v135 = vld [vmem:[%s3] sm:$0x1]
    %v137 = vlaneseq
    %v138 = vshrl.u32 %v137, 7
    %v139 = vsub.s32 0, %v138
    %v140 = vrot.slane %v135, %v139
    %v142 = vadd.f32 %v134, %v140
    %143 = vst [vmem:[#allocation2] sm:$0xff] %v142
    // Predicated region
    $region18: #{ei_rec_linear.1} parent=1 // pred_check
      _
    $region19: #{ei_rec_linear.1} parent=1 // pred_check_branch
      %145 = sbr.rel (0) target = $region21
    $region20: #{ei_rec_linear.1} parent=1 // pred_region
      %s147 = ssub.s32 128, 128
      %148 = vsyncadd [#allocation3], %s147
      %s150 = sshll.u32 [#allocation2], 4
      %s151 = int_to_ptr.vmem [resolvable:$true] %s150
      %153 = dma.vmem_to_hbm [thread:$0]  %s151, 128, %s4, [#allocation3]
    $region21: #{ei_rec_linear.1} parent=1 // pred_fallthru
      _
    // Predicated region
    $region22: #{ei_rec_linear.1} parent=1 // pred_check
      _
    $region23: #{ei_rec_linear.1} parent=1 // pred_check_branch
      %155 = sbr.rel (0) target = $region25
    $region24: #{ei_rec_linear.1} parent=1 // pred_region
      %156 = dma.done [#allocation3], 128
    $region25: #{ei_rec_linear.1} parent=1 // pred_fallthru
      _
    %157 = vsyncpa [#allocation3], 1

</llo_original>
